<compile_context>
chip_gen: v7x
topology: tpu7x:2x2x1
jax: 0.10.0
libtpu: 0.0.40
codegen_flags: <defaults>
</compile_context>

<pallas_src>
import jax
import jax.numpy as jnp
from jax.experimental import pallas as pl
from jax.experimental.pallas import tpu as pltpu


# Tile caps: 512 * 2048 * 4 B = 4 MiB per f32 block; with double-buffered
# input + output that is ~16 MiB, comfortably under the 32 MiB default scoped
# VMEM on every TPU generation (and v7x's 64 MiB physical VMEM).
_MAX_C_TILE = 512    # second-to-last dim: keep a multiple of 8
_MAX_L_TILE = 2048   # last dim: keep a multiple of 128 (lane-dense stores)


def _chomp_kernel(x_ref, o_ref):
    # x_ref: (1, c_tile, l_tile_in), o_ref: (1, c_tile, l_tile_out).
    # In the aligned-tile path l_tile_in == l_tile_out and this slice is a
    # no-op (pure VMEM copy). In the small-L_out fallback path it drops the
    # chomped tail that was loaded as part of the full-L input block.
    o_ref[...] = x_ref[:, :, : o_ref.shape[-1]]


def chomp1d(x: jax.Array, chomp_size: int) -> jax.Array:
    """Pallas equivalent of Chomp1d.forward: x[:, :, :-chomp_size].contiguous()."""
    assert x.ndim == 3, "expected (N, C, L) input"
    n, c, l = x.shape
    assert 0 < chomp_size < l
    l_out = l - chomp_size

    # Channel tiling: full C if it fits the cap (always a legal block shape),
    # otherwise a multiple-of-8 tile; the ragged last block is masked by Pallas.
    if c <= _MAX_C_TILE:
        c_tile = c
    else:
        c_tile = (_MAX_C_TILE // 8) * 8

    if l_out >= 128:
        # Lane-aligned tiling over the *kept* region only: the input DMA
        # skips the chomped columns entirely. l_tile is a multiple of 128,
        # which is a legal block shape for both the (.., L) input and the
        # (.., L_out) output; any ragged final block is handled by masking.
        l_tile_out = min(_MAX_L_TILE, (l_out // 128) * 128)
        l_tile_in = l_tile_out
    else:
        # Tiny L_out: a sub-128 block is only legal when it equals the full
        # array dim, so load the full L row and slice in-kernel (cheap at
        # these sizes; this is exactly the previously-validated path).
        l_tile_in = l
        l_tile_out = l_out

    grid = (n, pl.cdiv(c, c_tile), pl.cdiv(l_out, l_tile_out))

    in_spec = pl.BlockSpec((1, c_tile, l_tile_in), lambda i, j, k: (i, j, k))
    out_spec = pl.BlockSpec((1, c_tile, l_tile_out), lambda i, j, k: (i, j, k))

    return pl.pallas_call(
        _chomp_kernel,
        out_shape=jax.ShapeDtypeStruct((n, c, l_out), x.dtype),
        grid_spec=pl.GridSpec(
            grid=grid,
            in_specs=[in_spec],
            out_specs=out_spec,
        ),
        compiler_params=pltpu.CompilerParams(
            # Every grid point is an independent copy -> all axes parallel,
            # so both TensorCores on v7x get work even when N is small/odd.
            dimension_semantics=("parallel", "parallel", "parallel"),
        ),
    )(x)


if __name__ == "__main__":
    key = jax.random.PRNGKey(0)

    # Small case matching the module's typical use (fallback path, L_out < 128).
    N, C, L = 2, 4, 16
    chomp_size = 3  # Chomp1d(chomp_size=3)
    x = jax.random.normal(key, (N, C, L), dtype=jnp.float32)

    out = chomp1d(x, chomp_size)
    out = jax.block_until_ready(out)

    ref = x[:, :, :-chomp_size]
    assert out.shape == (N, C, L - chomp_size), out.shape
    assert jnp.array_equal(out, ref), "mismatch vs reference slice (small case)"

    # Second (still small) case exercising the lane-aligned tiled path, where
    # the input DMA covers only the kept 256 columns.
    key2 = jax.random.PRNGKey(1)
    x2 = jax.random.normal(key2, (2, 16, 261), dtype=jnp.float32)
    out2 = jax.block_until_ready(chomp1d(x2, 5))
    assert jnp.array_equal(out2, x2[:, :, :-5]), "mismatch vs reference (tiled case)"

    print("KERNEL_OK")
</pallas_src>

<mosaic_0001>
module attributes {stable_mosaic.version = 11 : i64} {
  func.func @_chomp_kernel(%arg0: i32, %arg1: i32, %arg2: i32, %arg3: memref<1x4x16xf32, #tpu.memory_space<vmem>>, %arg4: memref<1x4x13xf32, #tpu.memory_space<vmem>>) attributes {dimension_semantics = [#tpu.dimension_semantics<parallel>, #tpu.dimension_semantics<parallel>, #tpu.dimension_semantics<parallel>], iteration_bounds = array<i64: 2, 1, 1>, scalar_prefetch = 0 : i64, scratch_operands = 0 : i64, tpu.core_type = #tpu.core_type<tc>, window_params = [{transform_indices = @transform_0, window_bounds = array<i64: 1, 4, 16>}, {transform_indices = @transform_1, window_bounds = array<i64: 1, 4, 13>}]} {
    %c0 = arith.constant 0 : index
    %c0_0 = arith.constant 0 : index
    %c0_1 = arith.constant 0 : index
    %0 = vector.load %arg3[%c0, %c0_0, %c0_1] : memref<1x4x16xf32, #tpu.memory_space<vmem>>, vector<1x4x13xf32>
    %c0_2 = arith.constant 0 : index
    %c0_3 = arith.constant 0 : index
    %c0_4 = arith.constant 0 : index
    %1 = vector.load %arg4[%c0_2, %c0_3, %c0_4] : memref<1x4x13xf32, #tpu.memory_space<vmem>>, vector<1x4x13xf32>
    tpu.vector_store %arg4[%c0_2, %c0_3, %c0_4], %0 {strides = array<i32>} : memref<1x4x13xf32, #tpu.memory_space<vmem>>, vector<1x4x13xf32>,
    return
  }
  func.func @transform_0(%arg0: i32, %arg1: i32, %arg2: i32) -> (i32, i32, i32) {
    %c0_i32 = arith.constant 0 : i32
    return %arg0, %arg1, %arg2 : i32, i32, i32
  }
  func.func @transform_1(%arg0: i32, %arg1: i32, %arg2: i32) -> (i32, i32, i32) {
    %c0_i32 = arith.constant 0 : i32
    return %arg0, %arg1, %arg2 : i32, i32, i32
  }
}

</mosaic_0001>

<llo_original>
// kernel: tpu_custom_call.1
$region0: #{tpu_custom_call.1}
  #allocation0 [shape = 'u32[]', space=smem, size = 0x4, offset = 0x4, fixed_abs, tag = 'smem constant byte address 0x4 - core index']
  #allocation1 [shape = 'u32[144,128]{1,0:T(1,128)}', space=vmem, size = 0x12000, scoped, tag = 'internal scratch']
  %s0 = inlined_call_operand.hbm [shape: f32[2,4,16], index: 0, kind: input, shape index: {}]
  %s1 = inlined_call_operand.hbm [shape: f32[2,4,13], index: 1, kind: output, shape index: {}]
  %s2 = sld [smem:[#allocation0]]
  $region41: #{tpu_custom_call.1} parent=0
    _
  %s4 = ssub.s32 1, %s2
  %s5 = scalar_select 0, %s4, %s2
  $region1: #{tpu_custom_call.1} parent=0
    #allocation2 [shape = 'u8[4096]{0}', space=vmem, size = 0x1000, scoped, tag = 'input window, operand 0']
    #allocation3 [shape = 's32[2]{0}', space=sflag, size = 0x8, scoped, tag = 'scoped memory for tpu_custom_call.1']
    #allocation4 [shape = 's32[2]{0}', space=sflag, size = 0x8, scoped, tag = 'scoped memory for tpu_custom_call.1']
    #allocation5 [shape = 'u8[4096]{0}', space=vmem, size = 0x1000, scoped, tag = 'output window, operand 0']
    %6 = vsyncpa [#allocation3], 0
    %s7 = scalar_lea.sflag [#allocation3], 1
    %8 = vsyncpa %s7, 0
    %9 = vsyncpa [#allocation4], 0
    %s10 = scalar_lea.sflag [#allocation4], 1
    %11 = vsyncpa %s10, 0
    loop: start=0, step=1, limit=4
    $region2: #{tpu_custom_call.1} parent=1 // loop_pre_header
      _
    $region3: #{tpu_custom_call.1} parent=1 // loop_header
      %s13 = sphi 0, %s17
      %p14 = scmp.ge.s32.totalorder %s13, 4
      %s20 = sphi 0, %s39
      %s21 = sphi 0, %s35
      %s22 = sphi 0, %s31
      %s23 = sphi 0, %s20
      %s24 = sphi 0, %s21
      %s25 = sphi 0, %s22
      %s26 = sphi 0, %s23
      %s27 = sphi 0, %s24
      %s28 = sphi 0, %s25
      %s46 = sphi 0, %s48
      %s49 = sphi 0, %s46
      %s50 = sphi 0, %s49
      %s66 = sphi 0, %s50
      %s76 = sphi 0, %s78
      %s79 = sphi 0, %s76
      %s80 = sphi 0, %s79
      %s96 = sphi 0, %s80
    $region4: #{tpu_custom_call.1} parent=1 // loop_header_branch
      %16 = sbr.rel (%p14) target = $region8
    $region5: #{tpu_custom_call.1} parent=1 // loop_body
      %s18 = ssub.s32 %s13, 1
      %s19 = ssub.s32 %s13, 2
      %s29 = sadd.s32 1, %s22
      %p30 = scmp.ge.s32.totalorder %s29, 1
      %s31 = scalar_select %p30, 0, %s29
      %s32 = sadd.s32 1, %s21
      %s33 = scalar_select %p30, %s32, %s21
      %p34 = scmp.ge.s32.totalorder %s33, 1
      %s35 = scalar_select %p34, 0, %s33
      %s36 = sadd.s32 1, %s20
      %s37 = scalar_select %p34, %s36, %s20
      %p38 = scmp.ge.s32.totalorder %s37, 2
      %s39 = scalar_select %p38, 0, %s37
      %s40 = ssub.s32 %s20, %s39
      %s41 = ssub.s32 %s21, %s35
      %s42 = sor.u32 %s40, %s41
      %s43 = ssub.s32 %s22, %s31
      %s44 = sor.u32 %s42, %s43
      %p45 = scmp.eq.s32.totalorder %s44, 0
      %s47 = sadd.s32 %s46, 1
      %s48 = scalar_select %p45, %s46, %s47
      %p51 = pneg %p45
      %p52 = scmp.eq.s32.totalorder %s13, 1
      %p53 = por %p51, %p52
      %p54 = scmp.ne.s32.totalorder %s46, %s49
      %p55 = scmp.eq.s32.totalorder %s13, 0
      %p56 = por %p54, %p55
      %p57 = scmp.ne.s32.totalorder %s46, %s49
      %p58 = scmp.eq.s32.totalorder %s18, 1
      %p59 = por %p57, %p58
      %p60 = scmp.ne.s32.totalorder %s49, %s50
      %p61 = scmp.eq.s32.totalorder %s18, 0
      %p62 = por %p60, %p61
      %p63 = scmp.ne.s32.totalorder %s49, %s50
      %p64 = scmp.eq.s32.totalorder %s19, 1
      %p65 = por %p63, %p64
      %p67 = scmp.ne.s32.totalorder %s50, %s66
      %p68 = scmp.eq.s32.totalorder %s19, 0
      %p69 = por %p67, %p68
      %s70 = ssub.s32 %s20, %s39
      %s71 = ssub.s32 %s21, %s35
      %s72 = sor.u32 %s70, %s71
      %s73 = ssub.s32 %s22, %s31
      %s74 = sor.u32 %s72, %s73
      %p75 = scmp.eq.s32.totalorder %s74, 0
      %s77 = sadd.s32 %s76, 1
      %s78 = scalar_select %p75, %s76, %s77
      %p81 = pneg %p75
      %p82 = scmp.eq.s32.totalorder %s13, 1
      %p83 = por %p81, %p82
      %p84 = scmp.ne.s32.totalorder %s76, %s79
      %p85 = scmp.eq.s32.totalorder %s13, 0
      %p86 = por %p84, %p85
      %p87 = scmp.ne.s32.totalorder %s76, %s79
      %p88 = scmp.eq.s32.totalorder %s18, 1
      %p89 = por %p87, %p88
      %p90 = scmp.ne.s32.totalorder %s79, %s80
      %p91 = scmp.eq.s32.totalorder %s18, 0
      %p92 = por %p90, %p91
      %p93 = scmp.ne.s32.totalorder %s79, %s80
      %p94 = scmp.eq.s32.totalorder %s19, 1
      %p95 = por %p93, %p94
      %p97 = scmp.ne.s32.totalorder %s80, %s96
      %p98 = scmp.eq.s32.totalorder %s19, 0
      %p99 = por %p97, %p98
      %p100 = scmp.le.s32.totalorder 1, %s13
      %p101 = scmp.lt.s32.totalorder %s13, 3
      %p102 = pnand %p100, %p101
      %p103 = pneg %p102
      // Predicated region
      $region9: #{tpu_custom_call.1} parent=5 // pred_check
        _
      $region10: #{tpu_custom_call.1} parent=5 // pred_check_branch
        %105 = sbr.rel (%p102) target = $region12
      $region11: #{tpu_custom_call.1} parent=5 // pred_region
        %s106 = ssub.s32 %s13, 1
      $region12: #{tpu_custom_call.1} parent=5 // pred_fallthru
        _
      %p107 = scmp.lt.s32.totalorder %s13, 2
      // Predicated region
      $region13: #{tpu_custom_call.1} parent=5 // pred_check
        %p108 = pneg %p107
      $region14: #{tpu_custom_call.1} parent=5 // pred_check_branch
        %110 = sbr.rel (%p108) target = $region16
      $region15: #{tpu_custom_call.1} parent=5 // pred_region
        // Predicated region
        $region17: #{tpu_custom_call.1} parent=15 // pred_check
          %p111 = pneg %p56
        $region18: #{tpu_custom_call.1} parent=15 // pred_check_branch
          %113 = sbr.rel (%p111) target = $region20
        $region19: #{tpu_custom_call.1} parent=15 // pred_region
          %s114 = sand.u32 %s46, 1
          %s115 = scalar_lea.sflag [#allocation3], %s114
          %s116 = sand.u32 %s46, 1
          %s117 = smul.addr %s116, 4
          %s118 = scalar_lea.vmem [#allocation2], %s117
          %s120 = ssub.s32 64, 64
          %121 = vsyncadd %s115, %s120
          %s122 = sadd.s32 %s22, %s21
          %s123 = sadd.s32 %s122, %s20
          %s124 = smul.addr %s123, 64
          %s125 = scalar_lea.hbm %s0, %s124
          %s127 = sshll.u32 %s118, 4
          %s128 = int_to_ptr.vmem [resolvable:$true] %s127
          %130 = dma.hbm_to_vmem [thread:$0]  %s125, 64, %s128, %s115
        $region20: #{tpu_custom_call.1} parent=15 // pred_fallthru
          _
      $region16: #{tpu_custom_call.1} parent=5 // pred_fallthru
        _
      %p131 = scmp.le.s32.totalorder 1, %s13
      %p132 = scmp.lt.s32.totalorder %s13, 3
      %p133 = pnand %p131, %p132
      %p134 = pneg %p133
      // Predicated region
      $region21: #{tpu_custom_call.1} parent=5 // pred_check
        _
      $region22: #{tpu_custom_call.1} parent=5 // pred_check_branch
        %136 = sbr.rel (%p133) target = $region24
      $region23: #{tpu_custom_call.1} parent=5 // pred_region
        %s137 = ssub.s32 %s13, 1
        %s138 = sand.u32 %s49, 1
        %s139 = scalar_lea.sflag [#allocation3], %s138
        %s140 = sand.u32 %s49, 1
        %s141 = smul.addr %s140, 4
        %s142 = scalar_lea.vmem [#allocation2], %s141
        // Predicated region
        $region25: #{tpu_custom_call.1} parent=23 // pred_check
          %p143 = pneg %p62
        $region26: #{tpu_custom_call.1} parent=23 // pred_check_branch
          %145 = sbr.rel (%p143) target = $region28
        $region27: #{tpu_custom_call.1} parent=23 // pred_region
          %146 = dma.done %s139, 64
        $region28: #{tpu_custom_call.1} parent=23 // pred_fallthru
          _
        %s147 = sand.u32 %s49, 1
        %s148 = scalar_lea.sflag [#allocation3], %s147
        %s149 = sand.u32 %s49, 1
        %s150 = smul.addr %s149, 4
        %s151 = scalar_lea.vmem [#allocation2], %s150
        %p152 = pneg %p62
        %p153 = pneg %p59
        %p154 = pneg %p92
        %p155 = pneg %p89
        %s156 = sand.u32 %s79, 1
        %s157 = scalar_lea.sflag [#allocation4], %s156
        %s158 = sand.u32 %s79, 1
        %s159 = smul.addr %s158, 4
        %s160 = scalar_lea.vmem [#allocation5], %s159
        %v161 = vld [vmem:[%s142] sm:$0xf]
        %vm162 = vcmask 101376
        %163 = vst.msk [vmem:[%s160] sm:$0xf] %vm162, %v161
        %s164 = sand.u32 %s79, 1
        %s165 = scalar_lea.sflag [#allocation4], %s164
        %s166 = sand.u32 %s79, 1
        %s167 = smul.addr %s166, 4
        %s168 = scalar_lea.vmem [#allocation5], %s167
        // Predicated region
        $region29: #{tpu_custom_call.1} parent=23 // pred_check
          %p169 = pneg %p89
        $region30: #{tpu_custom_call.1} parent=23 // pred_check_branch
          %171 = sbr.rel (%p169) target = $region32
        $region31: #{tpu_custom_call.1} parent=23 // pred_region
          %s173 = ssub.s32 64, 64
          %174 = vsyncadd %s165, %s173
          %s175 = sadd.s32 %s25, %s24
          %s176 = sadd.s32 %s175, %s23
          %s177 = smul.addr %s176, 64
          %s178 = scalar_lea.hbm %s1, %s177
          %s180 = sshll.u32 %s168, 4
          %s181 = int_to_ptr.vmem [resolvable:$true] %s180
          %183 = dma.vmem_to_hbm [thread:$0]  %s181, 64, %s178, %s165
        $region32: #{tpu_custom_call.1} parent=23 // pred_fallthru
          _
      $region24: #{tpu_custom_call.1} parent=5 // pred_fallthru
        _
      %p184 = scmp.le.s32.totalorder 2, %s13
      // Predicated region
      $region33: #{tpu_custom_call.1} parent=5 // pred_check
        %p185 = pneg %p184
      $region34: #{tpu_custom_call.1} parent=5 // pred_check_branch
        %187 = sbr.rel (%p185) target = $region36
      $region35: #{tpu_custom_call.1} parent=5 // pred_region
        %s188 = ssub.s32 %s13, 2
        // Predicated region
        $region37: #{tpu_custom_call.1} parent=35 // pred_check
          %p189 = pneg %p95
        $region38: #{tpu_custom_call.1} parent=35 // pred_check_branch
          %191 = sbr.rel (%p189) target = $region40
        $region39: #{tpu_custom_call.1} parent=35 // pred_region
          %s192 = sand.u32 %s80, 1
          %s193 = scalar_lea.sflag [#allocation4], %s192
          %s194 = sand.u32 %s80, 1
          %s195 = smul.addr %s194, 4
          %s196 = scalar_lea.vmem [#allocation5], %s195
          %197 = dma.done %s193, 64
        $region40: #{tpu_custom_call.1} parent=35 // pred_fallthru
          _
      $region36: #{tpu_custom_call.1} parent=5 // pred_fallthru
        _
    $region6: #{tpu_custom_call.1} parent=1 // loop_footer
      %s17 = sadd.s32 1, %s13
    $region7: #{tpu_custom_call.1} parent=1 // loop_footer_branch
      %12 = sbr.rel target = $region3
    $region8: #{tpu_custom_call.1} parent=1 // loop_exit
      _
    %198 = vsyncpa [#allocation3], 1
    %s199 = scalar_lea.sflag [#allocation3], 1
    %200 = vsyncpa %s199, 1
    %201 = vsyncpa [#allocation4], 1
    %s202 = scalar_lea.sflag [#allocation4], 1
    %203 = vsyncpa %s202, 1

</llo_original>
